<compile_context>
chip_gen: v6e
topology: v6e:2x2x1
jax: 0.10.0
libtpu: 0.0.40
codegen_flags: <defaults>
</compile_context>

<pallas_src>
import numpy as np
import jax
import jax.numpy as jnp
from jax.experimental import pallas as pl
from jax.experimental.pallas import tpu as pltpu

_LANE = 128


# ---------------------------------------------------------------------------
# Fused kernel: Collate cross-product + mean, in one launch.
# ---------------------------------------------------------------------------
def _make_fused_mean_kernel(k, inv_k):
    """Kernel fusing the whole collate chain and the 1/k scale.

    Ref order: p_1..p_k, s_1..s_k, p_out, s_out.  Every input ref arrives
    pre-reshaped so distribution j's axis sits at position j+1 of a
    rank-(k+1) array (size-1 everywhere else); the joint distribution is one
    pure broadcast expression: no in-kernel reshapes, no RMW of the output
    ref, exactly one lane-dense store per output.
    """

    def kernel(*refs):
        p_refs = refs[:k]
        s_refs = refs[k:2 * k]
        p_out = refs[2 * k]
        s_out = refs[2 * k + 1]

        # Joint probabilities accumulated as a VALUE.  Seed with the last
        # (lane-dense, 128-padded) distribution so every intermediate keeps a
        # 128-wide lane axis; broadcasting grows one axis per stage.
        acc_p = p_refs[k - 1][...]
        # mean_fn = np.mean: fold the 1/k scale into the tiny per-distribution
        # symbol vectors (no full-slab rescale pass afterwards).
        acc_s = s_refs[k - 1][...] * inv_k
        for j in range(k - 2, -1, -1):
            acc_p = acc_p * p_refs[j][...]
            acc_s = acc_s + s_refs[j][...] * inv_k

        # Single full-width, unmasked stores (lane dim is a multiple of 128
        # by construction in the wrapper).
        p_out[...] = jnp.broadcast_to(acc_p, p_out.shape)
        s_out[...] = jnp.broadcast_to(acc_s, s_out.shape)

    return kernel


def _round_up(x, m):
    return (x + m - 1) // m * m


# ---------------------------------------------------------------------------
# Wrapper
# ---------------------------------------------------------------------------
def mean_module(probs_list, syms_list, *, force_grid=False,
                vmem_block_budget_bytes=8 * 1024 * 1024):
    """Pallas equivalent of Mean()(*distrs) with the default mean_fn=np.mean.

    probs_list[j] : [B, N_j] float
    syms_list[j]  : [1, N_j] float
    Returns (joint_probs [B, prod(N_j)], mean_symbols [prod(N_j)]).
    """
    assert len(probs_list) == len(syms_list) and len(probs_list) >= 1
    k = len(probs_list)
    B = int(probs_list[0].shape[0])
    sizes = [int(p.shape[1]) for p in probs_list]
    T = int(np.prod(sizes))
    prefix = int(np.prod(sizes[:-1])) if k > 1 else 1

    # Pad the LAST distribution to a multiple of 128 so the joint's lane axis
    # is 128-aligned: every store is an unmasked full-lane vst.  Padded probs
    # are 0 (zero joint probability); padded entries are sliced off below.
    nk_pad = _round_up(sizes[-1], _LANE)
    padded_sizes = sizes[:-1] + [nk_pad]
    padded_T = int(np.prod(padded_sizes))

    probs = [p.astype(jnp.float32) for p in probs_list]
    syms = [s.astype(jnp.float32) for s in syms_list]
    pad = nk_pad - sizes[-1]
    if pad:
        probs[-1] = jnp.pad(probs[-1], ((0, 0), (0, pad)))
        syms[-1] = jnp.pad(syms[-1], ((0, 0), (0, pad)))

    # Reshape inputs (free, outside the kernel) to their broadcast positions.
    rank = k + 1

    def expanded(j, lead):
        return (lead,) + tuple(padded_sizes[i] if i == j else 1 for i in range(k))

    probs_in = [probs[j].reshape(expanded(j, B)) for j in range(k)]
    syms_in = [syms[j].reshape(expanded(j, 1)) for j in range(k)]

    out_p_shape = (B,) + tuple(padded_sizes)
    out_s_shape = (1,) + tuple(padded_sizes)

    # Tile the leading distribution index onto a grid when the resident joint
    # block would be large (mandatory at scale on v7x: 64 MiB VMEM, 2 TCs).
    joint_bytes = 4 * (B + 1) * padded_T
    use_grid = (force_grid or joint_bytes > vmem_block_budget_bytes) \
        and k >= 3 and sizes[0] > 1

    kernel = _make_fused_mean_kernel(k, 1.0 / k)

    flops = (B + 2) * padded_T * max(k - 1, 1)
    bytes_accessed = 4 * (sum((B + 1) * n for n in padded_sizes)
                          + (B + 1) * padded_T)
    cost = pl.CostEstimate(flops=flops, transcendentals=0,
                           bytes_accessed=bytes_accessed)

    if not use_grid:
        zero_idx = lambda: (0,) * rank
        in_specs = ([pl.BlockSpec(p.shape, zero_idx) for p in probs_in]
                    + [pl.BlockSpec(s.shape, zero_idx) for s in syms_in])
        out_specs = (pl.BlockSpec(out_p_shape, zero_idx),
                     pl.BlockSpec(out_s_shape, zero_idx))
        grid_kwargs = {}
        cparams = pltpu.CompilerParams(vmem_limit_bytes=32 * 1024 * 1024)
    else:
        # Independent output blocks over i1 -> "parallel" (v7x megacore).
        def lead_idx(i):
            return (0, i) + (0,) * (rank - 2)

        def const_idx(i):
            return (0,) * rank

        in_specs = []
        for j in range(k):
            if j == 0:
                in_specs.append(pl.BlockSpec((B, 1) + (1,) * (k - 1), lead_idx))
            else:
                in_specs.append(pl.BlockSpec(probs_in[j].shape, const_idx))
        for j in range(k):
            if j == 0:
                in_specs.append(pl.BlockSpec((1, 1) + (1,) * (k - 1), lead_idx))
            else:
                in_specs.append(pl.BlockSpec(syms_in[j].shape, const_idx))
        out_specs = (
            pl.BlockSpec((B, 1) + tuple(padded_sizes[1:]), lead_idx),
            pl.BlockSpec((1, 1) + tuple(padded_sizes[1:]), lead_idx),
        )
        grid_kwargs = {"grid": (sizes[0],)}
        cparams = pltpu.CompilerParams(
            dimension_semantics=("parallel",),
            vmem_limit_bytes=32 * 1024 * 1024)

    joint_p, mean_s = pl.pallas_call(
        kernel,
        out_shape=(jax.ShapeDtypeStruct(out_p_shape, jnp.float32),
                   jax.ShapeDtypeStruct(out_s_shape, jnp.float32)),
        in_specs=in_specs,
        out_specs=out_specs,
        cost_estimate=cost,
        compiler_params=cparams,
        **grid_kwargs,
    )(*probs_in, *syms_in)

    # Strip the 128-padding of the last distribution and flatten back to the
    # reference row-major tuple order (i1 most significant).
    joint = joint_p.reshape(B, prefix, nk_pad)[:, :, :sizes[-1]].reshape(B, T)
    means = mean_s.reshape(prefix, nk_pad)[:, :sizes[-1]].reshape(T)
    return joint, means


# ---------------------------------------------------------------------------
# Pure numpy reference (mirrors Collate + Mean semantics)
# ---------------------------------------------------------------------------
def _reference(probs_list, syms_list):
    p = np.asarray(probs_list[0], np.float32)
    tuples = np.asarray(syms_list[0], np.float32)[0][:, None]  # [N0, 1]
    for pn, sn in zip(probs_list[1:], syms_list[1:]):
        pn = np.asarray(pn, np.float32)
        sn = np.asarray(sn, np.float32)[0]
        Bn, M = p.shape
        N = pn.shape[1]
        p = (p[:, :, None] * pn[:, None, :]).reshape(Bn, M * N)
        tuples = np.concatenate(
            [np.repeat(tuples, N, axis=0), np.tile(sn[:, None], (M, 1))], axis=1)
    return p, tuples.mean(axis=1)


# ---------------------------------------------------------------------------
# Main
# ---------------------------------------------------------------------------
if __name__ == "__main__":
    key = jax.random.PRNGKey(0)
    B = 2
    sizes = (3, 4, 5)  # three input Distributions with 3, 4, 5 symbols

    probs_list, syms_list = [], []
    for n in sizes:
        key, k1, k2 = jax.random.split(key, 3)
        logits = jax.random.normal(k1, (B, n), dtype=jnp.float32)
        probs_list.append(jax.nn.softmax(logits, axis=-1))
        syms_list.append(
            jax.random.uniform(k2, (1, n), dtype=jnp.float32, minval=0.0, maxval=10.0))

    ref_probs, ref_means = _reference(
        [np.asarray(p) for p in probs_list], [np.asarray(s) for s in syms_list])

    # Single-block path (what the toy size uses by default).
    joint_probs, mean_syms = mean_module(probs_list, syms_list)
    joint_probs = jax.block_until_ready(joint_probs)
    mean_syms = jax.block_until_ready(mean_syms)
    np.testing.assert_allclose(np.asarray(joint_probs), ref_probs, rtol=1e-5, atol=1e-6)
    np.testing.assert_allclose(np.asarray(mean_syms), ref_means, rtol=1e-5, atol=1e-6)

    # Gridded path (what large joints / v7x use): tile over i1, parallel axis.
    joint_probs_g, mean_syms_g = mean_module(probs_list, syms_list, force_grid=True)
    joint_probs_g = jax.block_until_ready(joint_probs_g)
    mean_syms_g = jax.block_until_ready(mean_syms_g)
    np.testing.assert_allclose(np.asarray(joint_probs_g), ref_probs, rtol=1e-5, atol=1e-6)
    np.testing.assert_allclose(np.asarray(mean_syms_g), ref_means, rtol=1e-5, atol=1e-6)

    print("KERNEL_OK")
</pallas_src>

<mosaic_0001>
module attributes {stable_mosaic.version = 11 : i64} {
  func.func @kernel(%arg0: memref<2x3x1x1xf32, #tpu.memory_space<vmem>>, %arg1: memref<2x1x4x1xf32, #tpu.memory_space<vmem>>, %arg2: memref<2x1x1x128xf32, #tpu.memory_space<vmem>>, %arg3: memref<1x3x1x1xf32, #tpu.memory_space<vmem>>, %arg4: memref<1x1x4x1xf32, #tpu.memory_space<vmem>>, %arg5: memref<1x1x1x128xf32, #tpu.memory_space<vmem>>, %arg6: memref<2x3x4x128xf32, #tpu.memory_space<vmem>>, %arg7: memref<1x3x4x128xf32, #tpu.memory_space<vmem>>) attributes {dimension_semantics = [], scalar_prefetch = 0 : i64, scratch_operands = 0 : i64, tpu.core_type = #tpu.core_type<tc>} {
    %c0 = arith.constant 0 : index
    %c0_0 = arith.constant 0 : index
    %c0_1 = arith.constant 0 : index
    %c0_2 = arith.constant 0 : index
    %0 = vector.load %arg2[%c0, %c0_0, %c0_1, %c0_2] : memref<2x1x1x128xf32, #tpu.memory_space<vmem>>, vector<2x1x1x128xf32>
    %c0_3 = arith.constant 0 : index
    %c0_4 = arith.constant 0 : index
    %c0_5 = arith.constant 0 : index
    %c0_6 = arith.constant 0 : index
    %1 = vector.load %arg5[%c0_3, %c0_4, %c0_5, %c0_6] : memref<1x1x1x128xf32, #tpu.memory_space<vmem>>, vector<1x1x1x128xf32>
    %cst = arith.constant 0.333333343 : f32
    %2 = vector.broadcast %cst : f32 to vector<1x1x1x128xf32>
    %3 = arith.mulf %1, %2 : vector<1x1x1x128xf32>
    %c0_7 = arith.constant 0 : index
    %c0_8 = arith.constant 0 : index
    %c0_9 = arith.constant 0 : index
    %c0_10 = arith.constant 0 : index
    %4 = vector.load %arg1[%c0_7, %c0_8, %c0_9, %c0_10] : memref<2x1x4x1xf32, #tpu.memory_space<vmem>>, vector<2x1x4x1xf32>
    %5 = vector.broadcast %0 : vector<2x1x1x128xf32> to vector<2x1x4x128xf32>
    %6 = vector.broadcast %4 : vector<2x1x4x1xf32> to vector<2x1x4x128xf32>
    %7 = arith.mulf %5, %6 : vector<2x1x4x128xf32>
    %c0_11 = arith.constant 0 : index
    %c0_12 = arith.constant 0 : index
    %c0_13 = arith.constant 0 : index
    %c0_14 = arith.constant 0 : index
    %8 = vector.load %arg4[%c0_11, %c0_12, %c0_13, %c0_14] : memref<1x1x4x1xf32, #tpu.memory_space<vmem>>, vector<1x1x4x1xf32>
    %cst_15 = arith.constant 0.333333343 : f32
    %9 = vector.broadcast %cst_15 : f32 to vector<1x1x4x1xf32>
    %10 = arith.mulf %8, %9 : vector<1x1x4x1xf32>
    %11 = vector.broadcast %3 : vector<1x1x1x128xf32> to vector<1x1x4x128xf32>
    %12 = vector.broadcast %10 : vector<1x1x4x1xf32> to vector<1x1x4x128xf32>
    %13 = arith.addf %11, %12 : vector<1x1x4x128xf32>
    %c0_16 = arith.constant 0 : index
    %c0_17 = arith.constant 0 : index
    %c0_18 = arith.constant 0 : index
    %c0_19 = arith.constant 0 : index
    %14 = vector.load %arg0[%c0_16, %c0_17, %c0_18, %c0_19] : memref<2x3x1x1xf32, #tpu.memory_space<vmem>>, vector<2x3x1x1xf32>
    %15 = vector.broadcast %7 : vector<2x1x4x128xf32> to vector<2x3x4x128xf32>
    %16 = vector.broadcast %14 : vector<2x3x1x1xf32> to vector<2x3x4x128xf32>
    %17 = arith.mulf %15, %16 : vector<2x3x4x128xf32>
    %c0_20 = arith.constant 0 : index
    %c0_21 = arith.constant 0 : index
    %c0_22 = arith.constant 0 : index
    %c0_23 = arith.constant 0 : index
    %18 = vector.load %arg3[%c0_20, %c0_21, %c0_22, %c0_23] : memref<1x3x1x1xf32, #tpu.memory_space<vmem>>, vector<1x3x1x1xf32>
    %cst_24 = arith.constant 0.333333343 : f32
    %19 = vector.broadcast %cst_24 : f32 to vector<1x3x1x1xf32>
    %20 = arith.mulf %18, %19 : vector<1x3x1x1xf32>
    %21 = vector.broadcast %13 : vector<1x1x4x128xf32> to vector<1x3x4x128xf32>
    %22 = vector.broadcast %20 : vector<1x3x1x1xf32> to vector<1x3x4x128xf32>
    %23 = arith.addf %21, %22 : vector<1x3x4x128xf32>
    %c0_25 = arith.constant 0 : index
    %c0_26 = arith.constant 0 : index
    %c0_27 = arith.constant 0 : index
    %c0_28 = arith.constant 0 : index
    %24 = vector.load %arg6[%c0_25, %c0_26, %c0_27, %c0_28] : memref<2x3x4x128xf32, #tpu.memory_space<vmem>>, vector<2x3x4x128xf32>
    tpu.vector_store %arg6[%c0_25, %c0_26, %c0_27, %c0_28], %17 {strides = array<i32>} : memref<2x3x4x128xf32, #tpu.memory_space<vmem>>, vector<2x3x4x128xf32>,
    %c0_29 = arith.constant 0 : index
    %c0_30 = arith.constant 0 : index
    %c0_31 = arith.constant 0 : index
    %c0_32 = arith.constant 0 : index
    %25 = vector.load %arg7[%c0_29, %c0_30, %c0_31, %c0_32] : memref<1x3x4x128xf32, #tpu.memory_space<vmem>>, vector<1x3x4x128xf32>
    tpu.vector_store %arg7[%c0_29, %c0_30, %c0_31, %c0_32], %23 {strides = array<i32>} : memref<1x3x4x128xf32, #tpu.memory_space<vmem>>, vector<1x3x4x128xf32>,
    return
  }
}

</mosaic_0001>

<llo_original>
// kernel: tpu_custom_call.1
$region0: #{tpu_custom_call.1}
  #allocation0 [shape = 'u32[]', space=smem, size = 0x4, offset = 0x4, fixed_abs, tag = 'smem constant byte address 0x4 - core index']
  #allocation1 [shape = 'u32[144,128]{1,0:T(1,128)}', space=vmem, size = 0x12000, scoped, tag = 'internal scratch']
  %s0 = inlined_call_operand.vmem [shape: f32[2,3,1,1], index: 0, kind: input, shape index: {}]
  %s1 = inlined_call_operand.vmem [shape: f32[2,1,4,1], index: 1, kind: input, shape index: {}]
  %s2 = inlined_call_operand.vmem [shape: f32[2,1,1,128], index: 2, kind: input, shape index: {}]
  %s3 = inlined_call_operand.vmem [shape: f32[1,3,1,1], index: 3, kind: input, shape index: {}]
  %s4 = inlined_call_operand.vmem [shape: f32[1,1,4,1], index: 4, kind: input, shape index: {}]
  %s5 = inlined_call_operand.vmem [shape: f32[1,1,1,128], index: 5, kind: input, shape index: {}]
  %s6 = inlined_call_operand.hbm [shape: f32[2,3,4,128], index: 6, kind: output, shape index: {0}]
  %s7 = inlined_call_operand.hbm [shape: f32[1,3,4,128], index: 7, kind: output, shape index: {1}]
  %8 = xla_tuple %s6, %s7
  %s9 = sld [smem:[#allocation0]]
  $region42: #{tpu_custom_call.1} parent=0
    _
  %s11 = ssub.s32 1, %s9
  %s12 = scalar_select 0, %s11, %s9
  $region1: #{tpu_custom_call.1} parent=0
    #allocation2 [shape = 'u8[12288]{0}', space=vmem, size = 0x3000, scoped, tag = 'output window, operand 0, single buffered']
    #allocation3 [shape = 's32[1]{0}', space=sflag, size = 0x4, scoped, tag = 'scoped memory for tpu_custom_call.1']
    #allocation4 [shape = 'u8[6144]{0}', space=vmem, size = 0x1800, scoped, tag = 'output window, operand 1, single buffered']
    #allocation5 [shape = 's32[1]{0}', space=sflag, size = 0x4, scoped, tag = 'scoped memory for tpu_custom_call.1']
    %13 = vsyncpa [#allocation3], 0
    %14 = vsyncpa [#allocation5], 0
    // Predicated region
    $region2: #{tpu_custom_call.1} parent=1 // pred_check
      _
    $region3: #{tpu_custom_call.1} parent=1 // pred_check_branch
      %16 = sbr.rel (0) target = $region5
    $region4: #{tpu_custom_call.1} parent=1 // pred_region
      _
    $region5: #{tpu_custom_call.1} parent=1 // pred_fallthru
      _
    // Predicated region
    $region6: #{tpu_custom_call.1} parent=1 // pred_check
      _
    $region7: #{tpu_custom_call.1} parent=1 // pred_check_branch
      %18 = sbr.rel (0) target = $region9
    $region8: #{tpu_custom_call.1} parent=1 // pred_region
      _
    $region9: #{tpu_custom_call.1} parent=1 // pred_fallthru
      _
    // Predicated region
    $region10: #{tpu_custom_call.1} parent=1 // pred_check
      _
    $region11: #{tpu_custom_call.1} parent=1 // pred_check_branch
      %20 = sbr.rel (0) target = $region13
    $region12: #{tpu_custom_call.1} parent=1 // pred_region
      _
    $region13: #{tpu_custom_call.1} parent=1 // pred_fallthru
      _
    // Predicated region
    $region14: #{tpu_custom_call.1} parent=1 // pred_check
      _
    $region15: #{tpu_custom_call.1} parent=1 // pred_check_branch
      %22 = sbr.rel (0) target = $region17
    $region16: #{tpu_custom_call.1} parent=1 // pred_region
      _
    $region17: #{tpu_custom_call.1} parent=1 // pred_fallthru
      _
    // Predicated region
    $region18: #{tpu_custom_call.1} parent=1 // pred_check
      _
    $region19: #{tpu_custom_call.1} parent=1 // pred_check_branch
      %24 = sbr.rel (0) target = $region21
    $region20: #{tpu_custom_call.1} parent=1 // pred_region
      _
    $region21: #{tpu_custom_call.1} parent=1 // pred_fallthru
      _
    // Predicated region
    $region22: #{tpu_custom_call.1} parent=1 // pred_check
      _
    $region23: #{tpu_custom_call.1} parent=1 // pred_check_branch
      %26 = sbr.rel (0) target = $region25
    $region24: #{tpu_custom_call.1} parent=1 // pred_region
      _
    $region25: #{tpu_custom_call.1} parent=1 // pred_fallthru
      _
    %v27 = vld [vmem:[%s2] sm:$0x1]
    %v28 = vld [vmem:[%s2 + $0x1] sm:$0x1]
    %v29 = vld [vmem:[%s5] sm:$0x1]
    %v30 = vmul.f32 %v29, 0.33333334
    %v31 = vld [vmem:[%s1] sm:$0xf]
    %v32 = vld [vmem:[%s1 + $0x4] sm:$0xf]
    %v35 = vlaneseq
    %v36 = vshrl.u32 %v35, 7
    %v37 = vsub.s32 0, %v36
    %v38 = vrot.slane %v27, %v37
    %v39 = vlaneseq
    %v40 = vshrl.u32 %v39, 7
    %v41 = vsub.s32 0, %v40
    %v42 = vrot.slane %v28, %v41
    %46 = vset.pattern.permute.xlu0 0
    %47 = vperm.xlu0 %46, %v31
    %v48 = vpop.permute.xlu0 %47
    %51 = vset.pattern.permute.xlu0 0
    %52 = vperm.xlu0 %51, %v32
    %v53 = vpop.permute.xlu0 %52
    %v55 = vmul.f32 %v38, %v48
    %v56 = vmul.f32 %v42, %v53
    %v57 = vld [vmem:[%s4] sm:$0xf]
    %v58 = vmul.f32 %v57, 0.33333334
    %v60 = vlaneseq
    %v61 = vshrl.u32 %v60, 7
    %v62 = vsub.s32 0, %v61
    %v63 = vrot.slane %v30, %v62
    %66 = vset.pattern.permute.xlu0 0
    %67 = vperm.xlu0 %66, %v58
    %v68 = vpop.permute.xlu0 %67
    %v70 = vadd.f32 %v63, %v68
    %v71 = vld [vmem:[%s0] sm:$0x1]
    %v72 = vld [vmem:[%s0 + $0x1] sm:$0x1]
    %v73 = vld [vmem:[%s0 + $0x2] sm:$0x1]
    %v74 = vld [vmem:[%s0 + $0x3] sm:$0x1]
    %v75 = vld [vmem:[%s0 + $0x4] sm:$0x1]
    %v76 = vld [vmem:[%s0 + $0x5] sm:$0x1]
    %v83 = vlaneseq
    %v84 = vshrl.u32 %v83, 7
    %v85 = vsub.s32 0, %v84
    %v86 = vrot.slane %v71, %v85
    %v87 = vlaneseq
    %v88 = vshrl.u32 %v87, 7
    %v89 = vsub.s32 0, %v88
    %v90 = vrot.slane %v72, %v89
    %v91 = vlaneseq
    %v92 = vshrl.u32 %v91, 7
    %v93 = vsub.s32 0, %v92
    %v94 = vrot.slane %v73, %v93
    %v95 = vlaneseq
    %v96 = vshrl.u32 %v95, 7
    %v97 = vsub.s32 0, %v96
    %v98 = vrot.slane %v74, %v97
    %v99 = vlaneseq
    %v100 = vshrl.u32 %v99, 7
    %v101 = vsub.s32 0, %v100
    %v102 = vrot.slane %v75, %v101
    %v103 = vlaneseq
    %v104 = vshrl.u32 %v103, 7
    %v105 = vsub.s32 0, %v104
    %v106 = vrot.slane %v76, %v105
    %107 = vset.pattern.permute.xlu0 0
    %108 = vperm.xlu0 %107, %v86
    %v109 = vpop.permute.xlu0 %108
    %111 = vset.pattern.permute.xlu0 0
    %112 = vperm.xlu0 %111, %v90
    %v113 = vpop.permute.xlu0 %112
    %115 = vset.pattern.permute.xlu0 0
    %116 = vperm.xlu0 %115, %v94
    %v117 = vpop.permute.xlu0 %116
    %119 = vset.pattern.permute.xlu0 0
    %120 = vperm.xlu0 %119, %v98
    %v121 = vpop.permute.xlu0 %120
    %123 = vset.pattern.permute.xlu0 0
    %124 = vperm.xlu0 %123, %v102
    %v125 = vpop.permute.xlu0 %124
    %127 = vset.pattern.permute.xlu0 0
    %128 = vperm.xlu0 %127, %v106
    %v129 = vpop.permute.xlu0 %128
    %v131 = vmul.f32 %v55, %v109
    %v132 = vmul.f32 %v55, %v113
    %v133 = vmul.f32 %v55, %v117
    %v134 = vmul.f32 %v56, %v121
    %v135 = vmul.f32 %v56, %v125
    %v136 = vmul.f32 %v56, %v129
    %v137 = vld [vmem:[%s3] sm:$0x1]
    %v138 = vld [vmem:[%s3 + $0x1] sm:$0x1]
    %v139 = vld [vmem:[%s3 + $0x2] sm:$0x1]
    %v140 = vmul.f32 %v137, 0.33333334
    %v141 = vmul.f32 %v138, 0.33333334
    %v142 = vmul.f32 %v139, 0.33333334
    %v146 = vlaneseq
    %v147 = vshrl.u32 %v146, 7
    %v148 = vsub.s32 0, %v147
    %v149 = vrot.slane %v140, %v148
    %v150 = vlaneseq
    %v151 = vshrl.u32 %v150, 7
    %v152 = vsub.s32 0, %v151
    %v153 = vrot.slane %v141, %v152
    %v154 = vlaneseq
    %v155 = vshrl.u32 %v154, 7
    %v156 = vsub.s32 0, %v155
    %v157 = vrot.slane %v142, %v156
    %158 = vset.pattern.permute.xlu0 0
    %159 = vperm.xlu0 %158, %v149
    %v160 = vpop.permute.xlu0 %159
    %162 = vset.pattern.permute.xlu0 0
    %163 = vperm.xlu0 %162, %v153
    %v164 = vpop.permute.xlu0 %163
    %166 = vset.pattern.permute.xlu0 0
    %167 = vperm.xlu0 %166, %v157
    %v168 = vpop.permute.xlu0 %167
    %v170 = vadd.f32 %v70, %v160
    %v171 = vadd.f32 %v70, %v164
    %v172 = vadd.f32 %v70, %v168
    %173 = vst [vmem:[#allocation2] sm:$0xf] %v131
    %174 = vst [vmem:[#allocation2 + $0x4] sm:$0xf] %v132
    %175 = vst [vmem:[#allocation2 + $0x8] sm:$0xf] %v133
    %176 = vst [vmem:[#allocation2 + $0xc] sm:$0xf] %v134
    %177 = vst [vmem:[#allocation2 + $0x10] sm:$0xf] %v135
    %178 = vst [vmem:[#allocation2 + $0x14] sm:$0xf] %v136
    %179 = vst [vmem:[#allocation4] sm:$0xf] %v170
    %180 = vst [vmem:[#allocation4 + $0x4] sm:$0xf] %v171
    %181 = vst [vmem:[#allocation4 + $0x8] sm:$0xf] %v172
    // Predicated region
    $region26: #{tpu_custom_call.1} parent=1 // pred_check
      _
    $region27: #{tpu_custom_call.1} parent=1 // pred_check_branch
      %183 = sbr.rel (0) target = $region29
    $region28: #{tpu_custom_call.1} parent=1 // pred_region
      %s185 = ssub.s32 384, 384
      %186 = vsyncadd [#allocation3], %s185
      %s187 = sshll.u32 [#allocation2], 4
      %s188 = int_to_ptr.vmem [resolvable:$true] %s187
      %193 = dma.vmem_to_hbm [thread:$0]  %s188, 384, %s6, [#allocation3], 64, 64, 4
    $region29: #{tpu_custom_call.1} parent=1 // pred_fallthru
      _
    // Predicated region
    $region30: #{tpu_custom_call.1} parent=1 // pred_check
      _
    $region31: #{tpu_custom_call.1} parent=1 // pred_check_branch
      %195 = sbr.rel (0) target = $region33
    $region32: #{tpu_custom_call.1} parent=1 // pred_region
      %s197 = ssub.s32 192, 192
      %198 = vsyncadd [#allocation5], %s197
      %s199 = sshll.u32 [#allocation4], 4
      %s200 = int_to_ptr.vmem [resolvable:$true] %s199
      %205 = dma.vmem_to_hbm [thread:$0]  %s200, 192, %s7, [#allocation5], 64, 64, 4
    $region33: #{tpu_custom_call.1} parent=1 // pred_fallthru
      _
    // Predicated region
    $region34: #{tpu_custom_call.1} parent=1 // pred_check
      _
    $region35: #{tpu_custom_call.1} parent=1 // pred_check_branch
      %207 = sbr.rel (0) target = $region37
    $region36: #{tpu_custom_call.1} parent=1 // pred_region
      %208 = dma.done [#allocation3], 384
    $region37: #{tpu_custom_call.1} parent=1 // pred_fallthru
      _
    // Predicated region
    $region38: #{tpu_custom_call.1} parent=1 // pred_check
      _
    $region39: #{tpu_custom_call.1} parent=1 // pred_check_branch
      %210 = sbr.rel (0) target = $region41
    $region40: #{tpu_custom_call.1} parent=1 // pred_region
      %211 = dma.done [#allocation5], 192
    $region41: #{tpu_custom_call.1} parent=1 // pred_fallthru
      _
    %212 = vsyncpa [#allocation3], 1
    %213 = vsyncpa [#allocation5], 1

</llo_original>
